<compile_context>
chip_gen: v5e
topology: v5e:2x2
jax: 0.10.0
libtpu: 0.0.40
codegen_flags: <defaults>
</compile_context>

<pallas_src>
import numpy as np
import jax
import jax.numpy as jnp
from jax.experimental import pallas as pl
from jax.experimental.pallas import tpu as pltpu


# ----------------------------------------------------------------------------
# Fused kernel: one grid step per batch element.
#   x block:  [1, T, N*Cin]        rows = t, lanes = (node, in_channel)
#   out block:[1, Hb+Hf, N*Co]     rows = horizon, lanes = (node, out_channel)
# ----------------------------------------------------------------------------
def _make_fused_kernel(N, Cin, Ch, Co):
    NCin, NCh, NCo = N * Cin, N * Ch, N * Co
    # row offsets of the packed (block-diagonal) MLP weights
    offs = [0, NCin, NCin + NCh, NCin + 2 * NCh, NCin + 3 * NCh]

    def kernel(x_ref, wmlp_ref, gcn_ref, bias_ref, mt_ref, o_ref):
        # ---- fc1..fc4 (1x1 convs) + ReLU, all lanes dense (N*Ch wide) ----
        h = x_ref[0]                                               # [T, N*Cin]
        for i in range(4):
            w = wmlp_ref[offs[i]:offs[i + 1], :]                   # [.,  N*Ch]
            h = jnp.maximum(
                jnp.dot(h, w, preferred_element_type=jnp.float32)
                + bias_ref[i:i + 1, :], 0.0)                       # [T, N*Ch]

        # ---- GraphConv: adj contraction + channel mix fused into one matmul
        #      with kron(adj.T, Wg); bias tiled over nodes.
        y = (jnp.dot(h, gcn_ref[0:NCh, :], preferred_element_type=jnp.float32)
             + bias_ref[4:5, 0:NCo])                               # [T, N*Co]

        # ---- F.normalize(y, p=2, dim=node): per-(t, c) sum of squares over
        #      nodes, broadcast back via kron(ones(N,N), I_Co) matmul (keeps the
        #      lane-dense layout, no reshapes); exact rsqrt on the EUP.
        ssq = jnp.dot(y * y, gcn_ref[NCh:NCh + NCo, :],
                      preferred_element_type=jnp.float32)          # [T, N*Co]
        ynorm = y * jax.lax.rsqrt(jnp.maximum(ssq, 1e-24))         # eps=1e-12

        # ---- theta_{b,f}_fc + cos/sin seasonality basis folded:  mt @ ynorm
        o_ref[0] = jnp.dot(mt_ref[...], ynorm,
                           preferred_element_type=jnp.float32)     # [Hb+Hf, N*Co]

    return kernel


# ----------------------------------------------------------------------------
# Wrapper: host-side constant folding + single pallas_call + tiny epilogue.
# ----------------------------------------------------------------------------
def seasonality_block_forward(x, adj, params):
    B, Cin, N, T = x.shape
    Ch = params["w1"].shape[1]
    Co = params["wg"].shape[1]
    Hb = params["sb"].shape[1]          # backcast horizon (== T)
    Hf = params["sf"].shape[1]          # forecast horizon
    NCin, NCh, NCo = N * Cin, N * Ch, N * Co
    assert Ch >= Co, "bias pack assumes hidden_channels >= out_channels"

    hp = jax.lax.Precision.HIGHEST
    f32 = jnp.float32
    eyeN = jnp.eye(N, dtype=f32)
    eyeCo = jnp.eye(Co, dtype=f32)

    # ---- host-side constant folding (parameter-sized; in a real model these
    #      would be precomputed once per weight update, not per forward) ----
    # (a) per-pixel 1x1-conv weights -> block-diagonal kron(I_N, W) so the whole
    #     kernel runs in the "rows = t, lanes = (node, channel)" layout.
    wmlp_pack = jnp.concatenate(
        [jnp.kron(eyeN, params["w1"]),             # [N*Cin, N*Ch]
         jnp.kron(eyeN, params["w2"]),             # [N*Ch,  N*Ch]
         jnp.kron(eyeN, params["w3"]),
         jnp.kron(eyeN, params["w4"])], axis=0)    # [N*(Cin+3Ch), N*Ch]
    # (b) GraphConv adj contraction + channel mix fused: kron(adj.T, Wg);
    #     node-axis sum-of-squares broadcast: kron(ones(N,N), I_Co).
    gcn_pack = jnp.concatenate(
        [jnp.kron(adj.T, params["wg"]),                        # [N*Ch, N*Co]
         jnp.kron(jnp.ones((N, N), f32), eyeCo)], axis=0)      # [N*Co, N*Co]
    # (c) biases tiled over nodes; row 4 = GraphConv bias (first N*Co lanes).
    bias_pack = jnp.zeros((5, NCh), f32)
    bias_pack = bias_pack.at[0:1, :].set(jnp.tile(params["b1"], (1, N)))
    bias_pack = bias_pack.at[1:2, :].set(jnp.tile(params["b2"], (1, N)))
    bias_pack = bias_pack.at[2:3, :].set(jnp.tile(params["b3"], (1, N)))
    bias_pack = bias_pack.at[3:4, :].set(jnp.tile(params["b4"], (1, N)))
    bias_pack = bias_pack.at[4:5, 0:NCo].set(jnp.tile(params["bg"], (1, N)))
    # (d) theta_{b,f}_fc folded into the cos/sin bases, horizons stacked:
    #     mt[h, t] = sum_d S[d, h] * Wtheta[d, t]   ->   out = mt @ ynorm.
    mt_pack = jnp.concatenate(
        [jnp.dot(params["sb"].T, params["wtb"], precision=hp),    # [Hb, T]
         jnp.dot(params["sf"].T, params["wtf"], precision=hp)],   # [Hf, T]
        axis=0)                                                   # [Hb+Hf, T]
    # (e) x: NCHW -> rows = t, lanes = (node, in_channel)  (input-sized prep).
    x_rows = jnp.transpose(x, (0, 3, 2, 1)).reshape(B, T, NCin)

    cp = pltpu.CompilerParams(dimension_semantics=("parallel",),
                              vmem_limit_bytes=32 * 1024 * 1024)
    consts = (wmlp_pack, gcn_pack, bias_pack, mt_pack)

    def cspec(a):
        return pl.BlockSpec(a.shape, lambda i, nd=a.ndim: (0,) * nd)

    z = pl.pallas_call(
        _make_fused_kernel(N, Cin, Ch, Co),
        out_shape=jax.ShapeDtypeStruct((B, Hb + Hf, NCo), jnp.float32),
        grid_spec=pltpu.PrefetchScalarGridSpec(
            num_scalar_prefetch=0,
            grid=(B,),
            in_specs=[pl.BlockSpec((1, T, NCin), lambda i: (i, 0, 0))]
                     + [cspec(a) for a in consts],
            out_specs=pl.BlockSpec((1, Hb + Hf, NCo), lambda i: (i, 0, 0)),
        ),
        compiler_params=cp,
    )(x_rows, *consts)

    # Tiny output-sized epilogue: lanes (node, channel) -> [B, Co, N, horizon],
    # then split the stacked horizons into backcast / forecast.
    z = z.reshape(B, Hb + Hf, N, Co).transpose(0, 3, 2, 1)
    return z[..., :Hb], z[..., Hb:]


# ----------------------------------------------------------------------------
# Seasonality basis (cos/sin), identical to linear_space_multi + seasonality_model
# ----------------------------------------------------------------------------
def seasonality_basis(theta_dim, horizon):
    t = np.arange(horizon) / horizon
    if theta_dim % 2 == 0:
        p1, p2 = theta_dim // 2, theta_dim // 2
    else:
        p1, p2 = theta_dim // 2, theta_dim // 2 + 1
    s1 = np.stack([np.cos(2 * np.pi * i * t) for i in range(p1)])
    s2 = np.stack([np.sin(2 * np.pi * i * t) for i in range(p2)])
    return jnp.asarray(np.concatenate([s1, s2], axis=0), dtype=jnp.float32)


def init_params(key, Cin, Ch, Co, Td, T, F):
    ks = jax.random.split(key, 12)

    def uni(k, shape, bound):
        return jax.random.uniform(k, shape, jnp.float32, -bound, bound)

    params = {}
    # fc1..fc4 : Conv2d 1x1 weights stored as [in, out], biases as [1, out]
    dims = [(Cin, Ch), (Ch, Ch), (Ch, Ch), (Ch, Ch)]
    for i, (fi, fo) in enumerate(dims, start=1):
        b = 1.0 / np.sqrt(fi)
        params[f"w{i}"] = uni(ks[2 * (i - 1)], (fi, fo), b)
        params[f"b{i}"] = uni(ks[2 * (i - 1) + 1], (1, fo), b)
    # GraphConv: xavier_uniform(gain=sqrt(2)) weight, zero bias (as in the module)
    xb = np.sqrt(2.0) * np.sqrt(6.0 / (Ch + Co))
    params["wg"] = uni(ks[8], (Ch, Co), xb)
    params["bg"] = jnp.zeros((1, Co), jnp.float32)
    # theta_b_fc / theta_f_fc: Conv2d(backcast_length -> theta_dim, 1x1, no bias)
    tb = 1.0 / np.sqrt(T)
    params["wtb"] = uni(ks[9], (Td, T), tb)
    params["wtf"] = uni(ks[10], (Td, T), tb)
    # seasonality bases
    params["sb"] = seasonality_basis(Td, T)
    params["sf"] = seasonality_basis(Td, F)
    return params


# ----------------------------------------------------------------------------
# Plain-JAX reference (mirrors the PyTorch forward order exactly) for checking.
# ----------------------------------------------------------------------------
def reference_forward(x, adj, params):
    hp = jax.lax.Precision.HIGHEST
    h = jnp.transpose(x, (0, 2, 3, 1))                        # [B, N, T, Cin]
    for i in (1, 2, 3, 4):
        h = jax.nn.relu(
            jnp.einsum('bntc,co->bnto', h, params[f"w{i}"], precision=hp)
            + params[f"b{i}"][0])
    h = jnp.transpose(h, (0, 2, 1, 3))                        # [B, T, N, Ch]
    y = jnp.einsum('mn,btnc->btmc', adj, h, precision=hp)
    y = jnp.einsum('btnc,co->btno', y, params["wg"], precision=hp) + params["bg"][0]
    norm = jnp.sqrt(jnp.sum(y * y, axis=2, keepdims=True))
    y = y / jnp.maximum(norm, 1e-12)                          # [B, T, N, Co]

    def season(wt, s):
        theta = jnp.einsum('dt,btno->bdno', wt, y, precision=hp)   # [B, Td, N, Co]
        return jnp.einsum('bdno,dy->bony', theta, s, precision=hp)

    return season(params["wtb"], params["sb"]), season(params["wtf"], params["sf"])


if __name__ == "__main__":
    B, Cin, Ch, Co = 2, 4, 16, 8
    N, T, F, Td = 16, 16, 8, 8     # num_nodes, backcast_length, forecast_length, theta_dim

    key = jax.random.PRNGKey(0)
    kx, kadj, kp = jax.random.split(key, 3)
    x = jax.random.normal(kx, (B, Cin, N, T), dtype=jnp.float32)
    adj = jax.random.uniform(kadj, (N, N), dtype=jnp.float32)
    params = init_params(kp, Cin, Ch, Co, Td, T, F)

    backcast, forecast = jax.jit(seasonality_block_forward)(x, adj, params)
    backcast = jax.block_until_ready(backcast)
    forecast = jax.block_until_ready(forecast)

    ref_b, ref_f = reference_forward(x, adj, params)
    assert backcast.shape == (B, Co, N, T) and forecast.shape == (B, Co, N, F)
    assert np.allclose(np.asarray(backcast), np.asarray(ref_b), rtol=2e-3, atol=2e-3)
    assert np.allclose(np.asarray(forecast), np.asarray(ref_f), rtol=2e-3, atol=2e-3)

    print("KERNEL_OK")
</pallas_src>

<mosaic_0001>
module attributes {stable_mosaic.version = 11 : i64} {
  func.func @kernel(%arg0: i32, %arg1: memref<1x16x64xf32, #tpu.memory_space<vmem>>, %arg2: memref<832x256xf32, #tpu.memory_space<vmem>>, %arg3: memref<384x128xf32, #tpu.memory_space<vmem>>, %arg4: memref<5x256xf32, #tpu.memory_space<vmem>>, %arg5: memref<24x16xf32, #tpu.memory_space<vmem>>, %arg6: memref<1x24x128xf32, #tpu.memory_space<vmem>>) attributes {dimension_semantics = [#tpu.dimension_semantics<parallel>], iteration_bounds = array<i64: 2>, scalar_prefetch = 0 : i64, scratch_operands = 0 : i64, tpu.core_type = #tpu.core_type<tc>, window_params = [{transform_indices = @transform_0, window_bounds = array<i64: 1, 16, 64>}, {pipeline_mode = #tpu.pipeline_mode<synchronous>, transform_indices = @transform_1, window_bounds = array<i64: 832, 256>}, {pipeline_mode = #tpu.pipeline_mode<synchronous>, transform_indices = @transform_2, window_bounds = array<i64: 384, 128>}, {pipeline_mode = #tpu.pipeline_mode<synchronous>, transform_indices = @transform_3, window_bounds = array<i64: 5, 256>}, {pipeline_mode = #tpu.pipeline_mode<synchronous>, transform_indices = @transform_4, window_bounds = array<i64: 24, 16>}, {transform_indices = @transform_5, window_bounds = array<i64: 1, 24, 128>}]} {
    %c0 = arith.constant 0 : index
    %c0_0 = arith.constant 0 : index
    %c0_1 = arith.constant 0 : index
    %0 = vector.load %arg1[%c0, %c0_0, %c0_1] : memref<1x16x64xf32, #tpu.memory_space<vmem>>, vector<1x16x64xf32>
    %1 = vector.shape_cast %0 : vector<1x16x64xf32> to vector<16x64xf32>
    %c0_2 = arith.constant 0 : index
    %c0_3 = arith.constant 0 : index
    %2 = vector.load %arg2[%c0_2, %c0_3] : memref<832x256xf32, #tpu.memory_space<vmem>>, vector<64x256xf32>
    %cst = arith.constant dense<0.000000e+00> : vector<16x256xf32>
    %3 = tpu.matmul %1, %2, %cst {dimension_numbers = #tpu.dot_dimension_numbers<[1], [0], [0], [1], [0, 0, 1, 1], [], []>} : vector<16x64xf32>, vector<64x256xf32>, vector<16x256xf32> -> vector<16x256xf32>
    %c0_4 = arith.constant 0 : index
    %c0_5 = arith.constant 0 : index
    %4 = vector.load %arg4[%c0_4, %c0_5] : memref<5x256xf32, #tpu.memory_space<vmem>>, vector<1x256xf32>
    %5 = vector.broadcast %4 : vector<1x256xf32> to vector<16x256xf32>
    %6 = arith.addf %3, %5 : vector<16x256xf32>
    %cst_6 = arith.constant 0.000000e+00 : f32
    %7 = vector.broadcast %cst_6 : f32 to vector<16x256xf32>
    %8 = arith.maximumf %6, %7 : vector<16x256xf32>
    %c64 = arith.constant 64 : index
    %c0_7 = arith.constant 0 : index
    %9 = vector.load %arg2[%c64, %c0_7] : memref<832x256xf32, #tpu.memory_space<vmem>>, vector<256x256xf32>
    %cst_8 = arith.constant dense<0.000000e+00> : vector<16x256xf32>
    %10 = tpu.matmul %8, %9, %cst_8 {dimension_numbers = #tpu.dot_dimension_numbers<[1], [0], [0], [1], [0, 0, 1, 1], [], []>} : vector<16x256xf32>, vector<256x256xf32>, vector<16x256xf32> -> vector<16x256xf32>
    %c1 = arith.constant 1 : index
    %c0_9 = arith.constant 0 : index
    %11 = vector.load %arg4[%c1, %c0_9] : memref<5x256xf32, #tpu.memory_space<vmem>>, vector<1x256xf32>
    %12 = vector.broadcast %11 : vector<1x256xf32> to vector<16x256xf32>
    %13 = arith.addf %10, %12 : vector<16x256xf32>
    %cst_10 = arith.constant 0.000000e+00 : f32
    %14 = vector.broadcast %cst_10 : f32 to vector<16x256xf32>
    %15 = arith.maximumf %13, %14 : vector<16x256xf32>
    %c320 = arith.constant 320 : index
    %c0_11 = arith.constant 0 : index
    %16 = vector.load %arg2[%c320, %c0_11] : memref<832x256xf32, #tpu.memory_space<vmem>>, vector<256x256xf32>
    %cst_12 = arith.constant dense<0.000000e+00> : vector<16x256xf32>
    %17 = tpu.matmul %15, %16, %cst_12 {dimension_numbers = #tpu.dot_dimension_numbers<[1], [0], [0], [1], [0, 0, 1, 1], [], []>} : vector<16x256xf32>, vector<256x256xf32>, vector<16x256xf32> -> vector<16x256xf32>
    %c2 = arith.constant 2 : index
    %c0_13 = arith.constant 0 : index
    %18 = vector.load %arg4[%c2, %c0_13] : memref<5x256xf32, #tpu.memory_space<vmem>>, vector<1x256xf32>
    %19 = vector.broadcast %18 : vector<1x256xf32> to vector<16x256xf32>
    %20 = arith.addf %17, %19 : vector<16x256xf32>
    %cst_14 = arith.constant 0.000000e+00 : f32
    %21 = vector.broadcast %cst_14 : f32 to vector<16x256xf32>
    %22 = arith.maximumf %20, %21 : vector<16x256xf32>
    %c576 = arith.constant 576 : index
    %c0_15 = arith.constant 0 : index
    %23 = vector.load %arg2[%c576, %c0_15] : memref<832x256xf32, #tpu.memory_space<vmem>>, vector<256x256xf32>
    %cst_16 = arith.constant dense<0.000000e+00> : vector<16x256xf32>
    %24 = tpu.matmul %22, %23, %cst_16 {dimension_numbers = #tpu.dot_dimension_numbers<[1], [0], [0], [1], [0, 0, 1, 1], [], []>} : vector<16x256xf32>, vector<256x256xf32>, vector<16x256xf32> -> vector<16x256xf32>
    %c3 = arith.constant 3 : index
    %c0_17 = arith.constant 0 : index
    %25 = vector.load %arg4[%c3, %c0_17] : memref<5x256xf32, #tpu.memory_space<vmem>>, vector<1x256xf32>
    %26 = vector.broadcast %25 : vector<1x256xf32> to vector<16x256xf32>
    %27 = arith.addf %24, %26 : vector<16x256xf32>
    %cst_18 = arith.constant 0.000000e+00 : f32
    %28 = vector.broadcast %cst_18 : f32 to vector<16x256xf32>
    %29 = arith.maximumf %27, %28 : vector<16x256xf32>
    %c0_19 = arith.constant 0 : index
    %c0_20 = arith.constant 0 : index
    %30 = vector.load %arg3[%c0_19, %c0_20] : memref<384x128xf32, #tpu.memory_space<vmem>>, vector<256x128xf32>
    %cst_21 = arith.constant dense<0.000000e+00> : vector<16x128xf32>
    %31 = tpu.matmul %29, %30, %cst_21 {dimension_numbers = #tpu.dot_dimension_numbers<[1], [0], [0], [1], [0, 0, 1, 1], [], []>} : vector<16x256xf32>, vector<256x128xf32>, vector<16x128xf32> -> vector<16x128xf32>
    %c4 = arith.constant 4 : index
    %c0_22 = arith.constant 0 : index
    %32 = vector.load %arg4[%c4, %c0_22] : memref<5x256xf32, #tpu.memory_space<vmem>>, vector<1x128xf32>
    %33 = vector.broadcast %32 : vector<1x128xf32> to vector<16x128xf32>
    %34 = arith.addf %31, %33 : vector<16x128xf32>
    %35 = arith.mulf %34, %34 : vector<16x128xf32>
    %c256 = arith.constant 256 : index
    %c0_23 = arith.constant 0 : index
    %36 = vector.load %arg3[%c256, %c0_23] : memref<384x128xf32, #tpu.memory_space<vmem>>, vector<128x128xf32>
    %cst_24 = arith.constant dense<0.000000e+00> : vector<16x128xf32>
    %37 = tpu.matmul %35, %36, %cst_24 {dimension_numbers = #tpu.dot_dimension_numbers<[1], [0], [0], [1], [0, 0, 1, 1], [], []>} : vector<16x128xf32>, vector<128x128xf32>, vector<16x128xf32> -> vector<16x128xf32>
    %cst_25 = arith.constant 1.000000e-24 : f32
    %38 = vector.broadcast %cst_25 : f32 to vector<16x128xf32>
    %39 = arith.maximumf %37, %38 : vector<16x128xf32>
    %40 = math.rsqrt %39 : vector<16x128xf32>
    %41 = arith.mulf %34, %40 : vector<16x128xf32>
    %c0_26 = arith.constant 0 : index
    %c0_27 = arith.constant 0 : index
    %42 = vector.load %arg5[%c0_26, %c0_27] : memref<24x16xf32, #tpu.memory_space<vmem>>, vector<24x16xf32>
    %cst_28 = arith.constant dense<0.000000e+00> : vector<24x128xf32>
    %43 = tpu.matmul %42, %41, %cst_28 {dimension_numbers = #tpu.dot_dimension_numbers<[1], [0], [0], [1], [0, 0, 1, 1], [], []>} : vector<24x16xf32>, vector<16x128xf32>, vector<24x128xf32> -> vector<24x128xf32>
    %c0_29 = arith.constant 0 : index
    %c0_30 = arith.constant 0 : index
    %c0_31 = arith.constant 0 : index
    %44 = vector.load %arg6[%c0_29, %c0_30, %c0_31] : memref<1x24x128xf32, #tpu.memory_space<vmem>>, vector<1x24x128xf32>
    %45 = vector.shape_cast %44 : vector<1x24x128xf32> to vector<24x128xf32>
    %46 = vector.shape_cast %43 : vector<24x128xf32> to vector<1x24x128xf32>
    tpu.vector_store %arg6[%c0_29, %c0_30, %c0_31], %46 {strides = array<i32>} : memref<1x24x128xf32, #tpu.memory_space<vmem>>, vector<1x24x128xf32>,
    return
  }
  func.func @transform_0(%arg0: i32) -> (i32, i32, i32) {
    %c0_i32 = arith.constant 0 : i32
    %c0_i32_0 = arith.constant 0 : i32
    %c0_i32_1 = arith.constant 0 : i32
    return %arg0, %c0_i32, %c0_i32_0 : i32, i32, i32
  }
  func.func @transform_1(%arg0: i32) -> (i32, i32) {
    %c0_i32 = arith.constant 0 : i32
    %c0_i32_0 = arith.constant 0 : i32
    %c0_i32_1 = arith.constant 0 : i32
    return %c0_i32, %c0_i32_0 : i32, i32
  }
  func.func @transform_2(%arg0: i32) -> (i32, i32) {
    %c0_i32 = arith.constant 0 : i32
    %c0_i32_0 = arith.constant 0 : i32
    %c0_i32_1 = arith.constant 0 : i32
    return %c0_i32, %c0_i32_0 : i32, i32
  }
  func.func @transform_3(%arg0: i32) -> (i32, i32) {
    %c0_i32 = arith.constant 0 : i32
    %c0_i32_0 = arith.constant 0 : i32
    %c0_i32_1 = arith.constant 0 : i32
    return %c0_i32, %c0_i32_0 : i32, i32
  }
  func.func @transform_4(%arg0: i32) -> (i32, i32) {
    %c0_i32 = arith.constant 0 : i32
    %c0_i32_0 = arith.constant 0 : i32
    %c0_i32_1 = arith.constant 0 : i32
    return %c0_i32, %c0_i32_0 : i32, i32
  }
  func.func @transform_5(%arg0: i32) -> (i32, i32, i32) {
    %c0_i32 = arith.constant 0 : i32
    %c0_i32_0 = arith.constant 0 : i32
    %c0_i32_1 = arith.constant 0 : i32
    return %arg0, %c0_i32, %c0_i32_0 : i32, i32, i32
  }
}

</mosaic_0001>

<llo_original>
// kernel: seasonality_block_forward.1
$region0: #{seasonality_block_forward.1}
  #allocation0 [shape = 'u32[]', space=smem, size = 0x4, offset = 0x4, fixed_abs, tag = 'smem constant byte address 0x4 - core index']
  #allocation1 [shape = 'u32[72,128]{1,0:T(1,128)}', space=vmem, size = 0x9000, scoped, tag = 'internal scratch']
  %s0 = inlined_call_operand.vmem [shape: f32[2,16,64], index: 0, kind: input, shape index: {}]
  %s1 = inlined_call_operand.vmem [shape: f32[832,256], index: 1, kind: input, shape index: {}]
  %s2 = inlined_call_operand.vmem [shape: f32[384,128], index: 2, kind: input, shape index: {}]
  %s3 = inlined_call_operand.vmem [shape: f32[5,256], index: 3, kind: input, shape index: {}]
  %s4 = inlined_call_operand.vmem [shape: f32[24,16], index: 4, kind: input, shape index: {}]
  %s5 = inlined_call_operand.vmem [shape: f32[2,24,128], index: 5, kind: output, shape index: {}]
  %s6 = sld [smem:[#allocation0]]
  $region53: #{seasonality_block_forward.1} parent=0
    _
  %s8 = ssub.s32 1, %s6
  %s9 = scalar_select 0, %s8, %s6
  loop: start=0, step=1, limit=4
  $region2: #{seasonality_block_forward.1} parent=0 // loop_pre_header
    _
  $region3: #{seasonality_block_forward.1} parent=0 // loop_header
    %s11 = sphi 0, %s15
    %p12 = scmp.ge.s32.totalorder %s11, 4
    %s21 = sphi 0, %s23
    %s24 = sphi 0, %s21
    %s25 = sphi 0, %s24
    %s41 = sphi 0, %s25
    %s45 = sphi 0, %s45
    %s47 = sphi 0, %s45
    %s48 = sphi 0, %s47
    %s62 = sphi 0, %s48
    %s66 = sphi 0, %s66
    %s68 = sphi 0, %s66
    %s69 = sphi 0, %s68
    %s83 = sphi 0, %s69
    %s87 = sphi 0, %s87
    %s89 = sphi 0, %s87
    %s90 = sphi 0, %s89
    %s104 = sphi 0, %s90
    %s108 = sphi 0, %s108
    %s110 = sphi 0, %s108
    %s111 = sphi 0, %s110
    %s125 = sphi 0, %s111
    %s131 = sphi 0, %s133
    %s134 = sphi 0, %s131
    %s135 = sphi 0, %s134
    %s151 = sphi 0, %s135
  $region4: #{seasonality_block_forward.1} parent=0 // loop_header_branch
    %14 = sbr.rel (%p12) target = $region8
  $region5: #{seasonality_block_forward.1} parent=0 // loop_body
    %s16 = ssub.s32 %s11, 1
    %s17 = ssub.s32 %s11, 2
    %s18 = sadd.s32 %s11, 1
    %s19 = ssub.s32 %s11, %s18
    %p20 = scmp.eq.s32.totalorder %s19, 0
    %s22 = sadd.s32 %s21, 1
    %s23 = scalar_select %p20, %s21, %s22
    %p26 = pneg %p20
    %p27 = scmp.eq.s32.totalorder %s11, 1
    %p28 = por %p26, %p27
    %p29 = scmp.ne.s32.totalorder %s21, %s24
    %p30 = scmp.eq.s32.totalorder %s11, 0
    %p31 = por %p29, %p30
    %p32 = scmp.ne.s32.totalorder %s21, %s24
    %p33 = scmp.eq.s32.totalorder %s16, 1
    %p34 = por %p32, %p33
    %p35 = scmp.ne.s32.totalorder %s24, %s25
    %p36 = scmp.eq.s32.totalorder %s16, 0
    %p37 = por %p35, %p36
    %p38 = scmp.ne.s32.totalorder %s24, %s25
    %p39 = scmp.eq.s32.totalorder %s17, 1
    %p40 = por %p38, %p39
    %p42 = scmp.ne.s32.totalorder %s25, %s41
    %p43 = scmp.eq.s32.totalorder %s17, 0
    %p44 = por %p42, %p43
    %s46 = sadd.s32 %s45, 1
    %p49 = scmp.eq.s32.totalorder %s11, 1
    %p50 = scmp.ne.s32.totalorder %s45, %s47
    %p51 = scmp.eq.s32.totalorder %s11, 0
    %p52 = por %p50, %p51
    %p53 = scmp.ne.s32.totalorder %s45, %s47
    %p54 = scmp.eq.s32.totalorder %s16, 1
    %p55 = por %p53, %p54
    %p56 = scmp.ne.s32.totalorder %s47, %s48
    %p57 = scmp.eq.s32.totalorder %s16, 0
    %p58 = por %p56, %p57
    %p59 = scmp.ne.s32.totalorder %s47, %s48
    %p60 = scmp.eq.s32.totalorder %s17, 1
    %p61 = por %p59, %p60
    %p63 = scmp.ne.s32.totalorder %s48, %s62
    %p64 = scmp.eq.s32.totalorder %s17, 0
    %p65 = por %p63, %p64
    %s67 = sadd.s32 %s66, 1
    %p70 = scmp.eq.s32.totalorder %s11, 1
    %p71 = scmp.ne.s32.totalorder %s66, %s68
    %p72 = scmp.eq.s32.totalorder %s11, 0
    %p73 = por %p71, %p72
    %p74 = scmp.ne.s32.totalorder %s66, %s68
    %p75 = scmp.eq.s32.totalorder %s16, 1
    %p76 = por %p74, %p75
    %p77 = scmp.ne.s32.totalorder %s68, %s69
    %p78 = scmp.eq.s32.totalorder %s16, 0
    %p79 = por %p77, %p78
    %p80 = scmp.ne.s32.totalorder %s68, %s69
    %p81 = scmp.eq.s32.totalorder %s17, 1
    %p82 = por %p80, %p81
    %p84 = scmp.ne.s32.totalorder %s69, %s83
    %p85 = scmp.eq.s32.totalorder %s17, 0
    %p86 = por %p84, %p85
    %s88 = sadd.s32 %s87, 1
    %p91 = scmp.eq.s32.totalorder %s11, 1
    %p92 = scmp.ne.s32.totalorder %s87, %s89
    %p93 = scmp.eq.s32.totalorder %s11, 0
    %p94 = por %p92, %p93
    %p95 = scmp.ne.s32.totalorder %s87, %s89
    %p96 = scmp.eq.s32.totalorder %s16, 1
    %p97 = por %p95, %p96
    %p98 = scmp.ne.s32.totalorder %s89, %s90
    %p99 = scmp.eq.s32.totalorder %s16, 0
    %p100 = por %p98, %p99
    %p101 = scmp.ne.s32.totalorder %s89, %s90
    %p102 = scmp.eq.s32.totalorder %s17, 1
    %p103 = por %p101, %p102
    %p105 = scmp.ne.s32.totalorder %s90, %s104
    %p106 = scmp.eq.s32.totalorder %s17, 0
    %p107 = por %p105, %p106
    %s109 = sadd.s32 %s108, 1
    %p112 = scmp.eq.s32.totalorder %s11, 1
    %p113 = scmp.ne.s32.totalorder %s108, %s110
    %p114 = scmp.eq.s32.totalorder %s11, 0
    %p115 = por %p113, %p114
    %p116 = scmp.ne.s32.totalorder %s108, %s110
    %p117 = scmp.eq.s32.totalorder %s16, 1
    %p118 = por %p116, %p117
    %p119 = scmp.ne.s32.totalorder %s110, %s111
    %p120 = scmp.eq.s32.totalorder %s16, 0
    %p121 = por %p119, %p120
    %p122 = scmp.ne.s32.totalorder %s110, %s111
    %p123 = scmp.eq.s32.totalorder %s17, 1
    %p124 = por %p122, %p123
    %p126 = scmp.ne.s32.totalorder %s111, %s125
    %p127 = scmp.eq.s32.totalorder %s17, 0
    %p128 = por %p126, %p127
    %s129 = ssub.s32 %s11, %s18
    %p130 = scmp.eq.s32.totalorder %s129, 0
    %s132 = sadd.s32 %s131, 1
    %s133 = scalar_select %p130, %s131, %s132
    %p136 = pneg %p130
    %p137 = scmp.eq.s32.totalorder %s11, 1
    %p138 = por %p136, %p137
    %p139 = scmp.ne.s32.totalorder %s131, %s134
    %p140 = scmp.eq.s32.totalorder %s11, 0
    %p141 = por %p139, %p140
    %p142 = scmp.ne.s32.totalorder %s131, %s134
    %p143 = scmp.eq.s32.totalorder %s16, 1
    %p144 = por %p142, %p143
    %p145 = scmp.ne.s32.totalorder %s134, %s135
    %p146 = scmp.eq.s32.totalorder %s16, 0
    %p147 = por %p145, %p146
    %p148 = scmp.ne.s32.totalorder %s134, %s135
    %p149 = scmp.eq.s32.totalorder %s17, 1
    %p150 = por %p148, %p149
    %p152 = scmp.ne.s32.totalorder %s135, %s151
    %p153 = scmp.eq.s32.totalorder %s17, 0
    %p154 = por %p152, %p153
    %p155 = scmp.le.s32.totalorder 1, %s11
    %p156 = scmp.lt.s32.totalorder %s11, 3
    %p157 = pnand %p155, %p156
    %p158 = pneg %p157
    // Predicated region
    $region9: #{seasonality_block_forward.1} parent=5 // pred_check
      _
    $region10: #{seasonality_block_forward.1} parent=5 // pred_check_branch
      %160 = sbr.rel (%p157) target = $region12
    $region11: #{seasonality_block_forward.1} parent=5 // pred_region
      %s161 = ssub.s32 %s11, 1
      // Predicated region
      $region13: #{seasonality_block_forward.1} parent=11 // pred_check
        %p162 = pneg %p58
      $region14: #{seasonality_block_forward.1} parent=11 // pred_check_branch
        %164 = sbr.rel (%p162) target = $region16
      $region15: #{seasonality_block_forward.1} parent=11 // pred_region
        _
      $region16: #{seasonality_block_forward.1} parent=11 // pred_fallthru
        _
      // Predicated region
      $region17: #{seasonality_block_forward.1} parent=11 // pred_check
        %p165 = pneg %p79
      $region18: #{seasonality_block_forward.1} parent=11 // pred_check_branch
        %167 = sbr.rel (%p165) target = $region20
      $region19: #{seasonality_block_forward.1} parent=11 // pred_region
        _
      $region20: #{seasonality_block_forward.1} parent=11 // pred_fallthru
        _
      // Predicated region
      $region21: #{seasonality_block_forward.1} parent=11 // pred_check
        %p168 = pneg %p100
      $region22: #{seasonality_block_forward.1} parent=11 // pred_check_branch
        %170 = sbr.rel (%p168) target = $region24
      $region23: #{seasonality_block_forward.1} parent=11 // pred_region
        _
      $region24: #{seasonality_block_forward.1} parent=11 // pred_fallthru
        _
      // Predicated region
      $region25: #{seasonality_block_forward.1} parent=11 // pred_check
        %p171 = pneg %p121
      $region26: #{seasonality_block_forward.1} parent=11 // pred_check_branch
        %173 = sbr.rel (%p171) target = $region28
      $region27: #{seasonality_block_forward.1} parent=11 // pred_region
        _
      $region28: #{seasonality_block_forward.1} parent=11 // pred_fallthru
        _
    $region12: #{seasonality_block_forward.1} parent=5 // pred_fallthru
      _
    %p174 = scmp.lt.s32.totalorder %s11, 2
    // Predicated region
    $region29: #{seasonality_block_forward.1} parent=5 // pred_check
      %p175 = pneg %p174
    $region30: #{seasonality_block_forward.1} parent=5 // pred_check_branch
      %177 = sbr.rel (%p175) target = $region32
    $region31: #{seasonality_block_forward.1} parent=5 // pred_region
      // Predicated region
      $region33: #{seasonality_block_forward.1} parent=31 // pred_check
        %p178 = pneg %p31
      $region34: #{seasonality_block_forward.1} parent=31 // pred_check_branch
        %180 = sbr.rel (%p178) target = $region36
      $region35: #{seasonality_block_forward.1} parent=31 // pred_region
        %p181 = scmp.lt.s32.totalorder %s11, 1
        %s182 = scalar_select %p181, %s11, 1
        %s183 = smul.addr %s182, 2
        %s184 = smul.addr %s183, 8
        %s185 = scalar_lea.vmem %s0, %s184
      $region36: #{seasonality_block_forward.1} parent=31 // pred_fallthru
        _
    $region32: #{seasonality_block_forward.1} parent=5 // pred_fallthru
      _
    %p186 = scmp.le.s32.totalorder 1, %s11
    %p187 = scmp.lt.s32.totalorder %s11, 3
    %p188 = pnand %p186, %p187
    %p189 = pneg %p188
    // Predicated region
    $region37: #{seasonality_block_forward.1} parent=5 // pred_check
      _
    $region38: #{seasonality_block_forward.1} parent=5 // pred_check_branch
      %191 = sbr.rel (%p188) target = $region40
    $region39: #{seasonality_block_forward.1} parent=5 // pred_region
      %s192 = ssub.s32 %s11, 1
      %p193 = scmp.lt.s32.totalorder %s16, 1
      %s194 = scalar_select %p193, %s16, 1
      %s195 = smul.addr %s194, 2
      %s196 = smul.addr %s195, 8
      %s197 = scalar_lea.vmem %s0, %s196
      %p198 = pneg %p37
      %p199 = pneg %p34
      %p200 = pneg %p58
      %p201 = pneg %p55
      %p202 = pneg %p79
      %p203 = pneg %p76
      %p204 = pneg %p100
      %p205 = pneg %p97
      %p206 = pneg %p121
      %p207 = pneg %p118
      %p208 = pneg %p147
      %p209 = pneg %p144
      %p210 = scmp.lt.s32.totalorder %s16, 1
      %s211 = scalar_select %p210, %s16, 1
      %s212 = smul.addr %s211, 3
      %s213 = smul.addr %s212, 8
      %s214 = scalar_lea.vmem %s5, %s213
      %p215 = scmp.lt.s32.totalorder %s16, 1
      %s216 = scalar_select %p215, %s16, 1
      %s217 = smul.addr %s216, 2
      %s218 = smul.addr %s217, 8
      %s219 = scalar_lea.vmem %s0, %s218
      %p220 = scmp.lt.s32.totalorder %s16, 1
      %s221 = scalar_select %p220, %s16, 1
      %s222 = smul.addr %s221, 3
      %s223 = smul.addr %s222, 8
      %s224 = scalar_lea.vmem %s5, %s223
      %v225 = vld [vmem:[%s219] sm:$0xff]
      %v226 = vld [vmem:[%s219 + $0x8] sm:$0xff]
      %v227 = vld [vmem:[%s1] sm:$0xff]
      %v228 = vld [vmem:[%s1 + $0x8] sm:$0xff]
      %v229 = vld [vmem:[%s1 + $0x10] sm:$0xff]
      %v230 = vld [vmem:[%s1 + $0x18] sm:$0xff]
      %v231 = vld [vmem:[%s1 + $0x20] sm:$0xff]
      %v232 = vld [vmem:[%s1 + $0x28] sm:$0xff]
      %v233 = vld [vmem:[%s1 + $0x30] sm:$0xff]
      %v234 = vld [vmem:[%s1 + $0x38] sm:$0xff]
      %v235 = vld [vmem:[%s1 + $0x40] sm:$0xff]
      %v236 = vld [vmem:[%s1 + $0x48] sm:$0xff]
      %v237 = vld [vmem:[%s1 + $0x50] sm:$0xff]
      %v238 = vld [vmem:[%s1 + $0x58] sm:$0xff]
      %v239 = vld [vmem:[%s1 + $0x60] sm:$0xff]
      %v240 = vld [vmem:[%s1 + $0x68] sm:$0xff]
      %v241 = vld [vmem:[%s1 + $0x70] sm:$0xff]
      %v242 = vld [vmem:[%s1 + $0x78] sm:$0xff]
      %v243 = vld [vmem:[%s3] ss:$8 sm:$0x3]
      %v245 = vperm.slane %v243, 0
      %v246 = vperm.slane %v243, 1
      %vm249 = vcmask 523264
      %v251 = vsel %vm249, %v225, 0
      %v254 = vsel %vm249, %v226, 0
      %256 = vmatpush.msra.mxu0 0.0
      %257 = vmatpush.msra.mxu0 0.0
      %258 = vmatpush.msra.mxu0 0.0
      %259 = vmatpush.msra.mxu0 0.0
      %260 = vmatpush.msra.mxu0 0.0
      %261 = vmatpush.msra.mxu0 0.0
      %262 = vmatpush.msra.mxu0 0.0
      %263 = vmatpush.msra.mxu0 0.0
      %264 = vmatpush.msra.mxu0 %v241
      %265 = vmatpush.msra.mxu0 %v239
      %266 = vmatpush.msra.mxu0 %v237
      %267 = vmatpush.msra.mxu0 %v235
      %268 = vmatpush.msra.mxu0 %v233
      %269 = vmatpush.msra.mxu0 %v231
      %270 = vmatpush.msra.mxu0 %v229
      %271 = vmatpush.msra.mxu0 %v227
      %272 = vmatmul.f32.gmra.mxu0 %v251
      %v273 = vpop.f32.mrf.mxu0
      %v274 = vadd.f32 %v245, %v273
      %275 = vmatmul.f32.gmra.mxu0 %v254
      %v276 = vpop.f32.mrf.mxu0
      %v277 = vadd.f32 %v245, %v276
      %278 = vdwg.mxu0
      %279 = vmatpush.msra.mxu0 0.0
      %280 = vmatpush.msra.mxu0 0.0
      %281 = vmatpush.msra.mxu0 0.0
      %282 = vmatpush.msra.mxu0 0.0
      %283 = vmatpush.msra.mxu0 0.0
      %284 = vmatpush.msra.mxu0 0.0
      %285 = vmatpush.msra.mxu0 0.0
      %286 = vmatpush.msra.mxu0 0.0
      %287 = vmatpush.msra.mxu0 %v242
      %288 = vmatpush.msra.mxu0 %v240
      %289 = vmatpush.msra.mxu0 %v238
      %290 = vmatpush.msra.mxu0 %v236
      %291 = vmatpush.msra.mxu0 %v234
      %292 = vmatpush.msra.mxu0 %v232
      %293 = vmatpush.msra.mxu0 %v230
      %294 = vmatpush.msra.mxu0 %v228
      %295 = vmatmul.f32.gmra.mxu0 %v251
      %v296 = vpop.f32.mrf.mxu0
      %v297 = vadd.f32 %v246, %v296
      %298 = vmatmul.f32.gmra.mxu0 %v254
      %v299 = vpop.f32.mrf.mxu0
      %v300 = vadd.f32 %v246, %v299
      %301 = vdwg.mxu0
      %v302 = vmax.f32 %v274, 0.0
      %v303 = vmax.f32 %v297, 0.0
      %v304 = vmax.f32 %v277, 0.0
      %v305 = vmax.f32 %v300, 0.0
      %v306 = vld [vmem:[%s1 + $0x80] sm:$0xff]
      %v307 = vld [vmem:[%s1 + $0x88] sm:$0xff]
      %v308 = vld [vmem:[%s1 + $0x90] sm:$0xff]
      %v309 = vld [vmem:[%s1 + $0x98] sm:$0xff]
      %v310 = vld [vmem:[%s1 + $0xa0] sm:$0xff]
      %v311 = vld [vmem:[%s1 + $0xa8] sm:$0xff]
      %v312 = vld [vmem:[%s1 + $0xb0] sm:$0xff]
      %v313 = vld [vmem:[%s1 + $0xb8] sm:$0xff]
      %v314 = vld [vmem:[%s1 + $0xc0] sm:$0xff]
      %v315 = vld [vmem:[%s1 + $0xc8] sm:$0xff]
      %v316 = vld [vmem:[%s1 + $0xd0] sm:$0xff]
      %v317 = vld [vmem:[%s1 + $0xd8] sm:$0xff]
      %v318 = vld [vmem:[%s1 + $0xe0] sm:$0xff]
      %v319 = vld [vmem:[%s1 + $0xe8] sm:$0xff]
      %v320 = vld [vmem:[%s1 + $0xf0] sm:$0xff]
      %v321 = vld [vmem:[%s1 + $0xf8] sm:$0xff]
      %v322 = vld [vmem:[%s1 + $0x100] sm:$0xff]
      %v323 = vld [vmem:[%s1 + $0x108] sm:$0xff]
      %v324 = vld [vmem:[%s1 + $0x110] sm:$0xff]
      %v325 = vld [vmem:[%s1 + $0x118] sm:$0xff]
      %v326 = vld [vmem:[%s1 + $0x120] sm:$0xff]
      %v327 = vld [vmem:[%s1 + $0x128] sm:$0xff]
      %v328 = vld [vmem:[%s1 + $0x130] sm:$0xff]
      %v329 = vld [vmem:[%s1 + $0x138] sm:$0xff]
      %v330 = vld [vmem:[%s1 + $0x140] sm:$0xff]
      %v331 = vld [vmem:[%s1 + $0x148] sm:$0xff]
      %v332 = vld [vmem:[%s1 + $0x150] sm:$0xff]
      %v333 = vld [vmem:[%s1 + $0x158] sm:$0xff]
      %v334 = vld [vmem:[%s1 + $0x160] sm:$0xff]
      %v335 = vld [vmem:[%s1 + $0x168] sm:$0xff]
      %v336 = vld [vmem:[%s1 + $0x170] sm:$0xff]
      %v337 = vld [vmem:[%s1 + $0x178] sm:$0xff]
      %v338 = vld [vmem:[%s1 + $0x180] sm:$0xff]
      %v339 = vld [vmem:[%s1 + $0x188] sm:$0xff]
      %v340 = vld [vmem:[%s1 + $0x190] sm:$0xff]
      %v341 = vld [vmem:[%s1 + $0x198] sm:$0xff]
      %v342 = vld [vmem:[%s1 + $0x1a0] sm:$0xff]
      %v343 = vld [vmem:[%s1 + $0x1a8] sm:$0xff]
      %v344 = vld [vmem:[%s1 + $0x1b0] sm:$0xff]
      %v345 = vld [vmem:[%s1 + $0x1b8] sm:$0xff]
      %v346 = vld [vmem:[%s1 + $0x1c0] sm:$0xff]
      %v347 = vld [vmem:[%s1 + $0x1c8] sm:$0xff]
      %v348 = vld [vmem:[%s1 + $0x1d0] sm:$0xff]
      %v349 = vld [vmem:[%s1 + $0x1d8] sm:$0xff]
      %v350 = vld [vmem:[%s1 + $0x1e0] sm:$0xff]
      %v351 = vld [vmem:[%s1 + $0x1e8] sm:$0xff]
      %v352 = vld [vmem:[%s1 + $0x1f0] sm:$0xff]
      %v353 = vld [vmem:[%s1 + $0x1f8] sm:$0xff]
      %v354 = vld [vmem:[%s1 + $0x200] sm:$0xff]
      %v355 = vld [vmem:[%s1 + $0x208] sm:$0xff]
      %v356 = vld [vmem:[%s1 + $0x210] sm:$0xff]
      %v357 = vld [vmem:[%s1 + $0x218] sm:$0xff]
      %v358 = vld [vmem:[%s1 + $0x220] sm:$0xff]
      %v359 = vld [vmem:[%s1 + $0x228] sm:$0xff]
      %v360 = vld [vmem:[%s1 + $0x230] sm:$0xff]
      %v361 = vld [vmem:[%s1 + $0x238] sm:$0xff]
      %v362 = vld [vmem:[%s1 + $0x240] sm:$0xff]
      %v363 = vld [vmem:[%s1 + $0x248] sm:$0xff]
      %v364 = vld [vmem:[%s1 + $0x250] sm:$0xff]
      %v365 = vld [vmem:[%s1 + $0x258] sm:$0xff]
      %v366 = vld [vmem:[%s1 + $0x260] sm:$0xff]
      %v367 = vld [vmem:[%s1 + $0x268] sm:$0xff]
      %v368 = vld [vmem:[%s1 + $0x270] sm:$0xff]
      %v369 = vld [vmem:[%s1 + $0x278] sm:$0xff]
      %s370 = scalar_lea.vmem %s3, 1
      %v371 = vld [vmem:[%s370] ss:$8 sm:$0x3]
      %v373 = vperm.slane %v371, 0
      %v374 = vperm.slane %v371, 1
      %377 = vmatpush.msra.mxu0 %v336
      %378 = vmatpush.msra.mxu0 %v334
      %379 = vmatpush.msra.mxu0 %v332
      %380 = vmatpush.msra.mxu0 %v330
      %381 = vmatpush.msra.mxu0 %v328
      %382 = vmatpush.msra.mxu0 %v326
      %383 = vmatpush.msra.mxu0 %v324
      %384 = vmatpush.msra.mxu0 %v322
      %385 = vmatpush.msra.mxu0 %v320
      %386 = vmatpush.msra.mxu0 %v318
      %387 = vmatpush.msra.mxu0 %v316
      %388 = vmatpush.msra.mxu0 %v314
      %389 = vmatpush.msra.mxu0 %v312
      %390 = vmatpush.msra.mxu0 %v310
      %391 = vmatpush.msra.mxu0 %v308
      %392 = vmatpush.msra.mxu0 %v306
      %393 = vmatmul.f32.gmra.mxu0 %v302
      %v394 = vpop.f32.mrf.mxu0
      %v395 = vadd.f32 %v373, %v394
      %396 = vmatmul.f32.gmra.mxu0 %v304
      %v397 = vpop.f32.mrf.mxu0
      %v398 = vadd.f32 %v373, %v397
      %399 = vdwg.mxu0
      %400 = vmatpush.msra.mxu0 %v368
      %401 = vmatpush.msra.mxu0 %v366
      %402 = vmatpush.msra.mxu0 %v364
      %403 = vmatpush.msra.mxu0 %v362
      %404 = vmatpush.msra.mxu0 %v360
      %405 = vmatpush.msra.mxu0 %v358
      %406 = vmatpush.msra.mxu0 %v356
      %407 = vmatpush.msra.mxu0 %v354
      %408 = vmatpush.msra.mxu0 %v352
      %409 = vmatpush.msra.mxu0 %v350
      %410 = vmatpush.msra.mxu0 %v348
      %411 = vmatpush.msra.mxu0 %v346
      %412 = vmatpush.msra.mxu0 %v344
      %413 = vmatpush.msra.mxu0 %v342
      %414 = vmatpush.msra.mxu0 %v340
      %415 = vmatpush.msra.mxu0 %v338
      %416 = vmatmul.f32.gmra.mxu0 %v303
      %v417 = vpop.f32.mrf.mxu0
      %v418 = vadd.f32 %v395, %v417
      %419 = vmatmul.f32.gmra.mxu0 %v305
      %v420 = vpop.f32.mrf.mxu0
      %v421 = vadd.f32 %v398, %v420
      %422 = vdwg.mxu0
      %423 = vmatpush.msra.mxu0 %v337
      %424 = vmatpush.msra.mxu0 %v335
      %425 = vmatpush.msra.mxu0 %v333
      %426 = vmatpush.msra.mxu0 %v331
      %427 = vmatpush.msra.mxu0 %v329
      %428 = vmatpush.msra.mxu0 %v327
      %429 = vmatpush.msra.mxu0 %v325
      %430 = vmatpush.msra.mxu0 %v323
      %431 = vmatpush.msra.mxu0 %v321
      %432 = vmatpush.msra.mxu0 %v319
      %433 = vmatpush.msra.mxu0 %v317
      %434 = vmatpush.msra.mxu0 %v315
      %435 = vmatpush.msra.mxu0 %v313
      %436 = vmatpush.msra.mxu0 %v311
      %437 = vmatpush.msra.mxu0 %v309
      %438 = vmatpush.msra.mxu0 %v307
      %439 = vmatmul.f32.gmra.mxu0 %v302
      %v440 = vpop.f32.mrf.mxu0
      %v441 = vadd.f32 %v374, %v440
      %442 = vmatmul.f32.gmra.mxu0 %v304
      %v443 = vpop.f32.mrf.mxu0
      %v444 = vadd.f32 %v374, %v443
      %445 = vdwg.mxu0
      %446 = vmatpush.msra.mxu0 %v369
      %447 = vmatpush.msra.mxu0 %v367
      %448 = vmatpush.msra.mxu0 %v365
      %449 = vmatpush.msra.mxu0 %v363
      %450 = vmatpush.msra.mxu0 %v361
      %451 = vmatpush.msra.mxu0 %v359
      %452 = vmatpush.msra.mxu0 %v357
      %453 = vmatpush.msra.mxu0 %v355
      %454 = vmatpush.msra.mxu0 %v353
      %455 = vmatpush.msra.mxu0 %v351
      %456 = vmatpush.msra.mxu0 %v349
      %457 = vmatpush.msra.mxu0 %v347
      %458 = vmatpush.msra.mxu0 %v345
      %459 = vmatpush.msra.mxu0 %v343
      %460 = vmatpush.msra.mxu0 %v341
      %461 = vmatpush.msra.mxu0 %v339
      %462 = vmatmul.f32.gmra.mxu0 %v303
      %v463 = vpop.f32.mrf.mxu0
      %v464 = vadd.f32 %v441, %v463
      %465 = vmatmul.f32.gmra.mxu0 %v305
      %v466 = vpop.f32.mrf.mxu0
      %v467 = vadd.f32 %v444, %v466
      %468 = vdwg.mxu0
      %v469 = vmax.f32 %v418, 0.0
      %v470 = vmax.f32 %v464, 0.0
      %v471 = vmax.f32 %v421, 0.0
      %v472 = vmax.f32 %v467, 0.0
      %v473 = vld [vmem:[%s1 + $0x280] sm:$0xff]
      %v474 = vld [vmem:[%s1 + $0x288] sm:$0xff]
      %v475 = vld [vmem:[%s1 + $0x290] sm:$0xff]
      %v476 = vld [vmem:[%s1 + $0x298] sm:$0xff]
      %v477 = vld [vmem:[%s1 + $0x2a0] sm:$0xff]
      %v478 = vld [vmem:[%s1 + $0x2a8] sm:$0xff]
      %v479 = vld [vmem:[%s1 + $0x2b0] sm:$0xff]
      %v480 = vld [vmem:[%s1 + $0x2b8] sm:$0xff]
      %v481 = vld [vmem:[%s1 + $0x2c0] sm:$0xff]
      %v482 = vld [vmem:[%s1 + $0x2c8] sm:$0xff]
      %v483 = vld [vmem:[%s1 + $0x2d0] sm:$0xff]
      %v484 = vld [vmem:[%s1 + $0x2d8] sm:$0xff]
      %v485 = vld [vmem:[%s1 + $0x2e0] sm:$0xff]
      %v486 = vld [vmem:[%s1 + $0x2e8] sm:$0xff]
      %v487 = vld [vmem:[%s1 + $0x2f0] sm:$0xff]
      %v488 = vld [vmem:[%s1 + $0x2f8] sm:$0xff]
      %v489 = vld [vmem:[%s1 + $0x300] sm:$0xff]
      %v490 = vld [vmem:[%s1 + $0x308] sm:$0xff]
      %v491 = vld [vmem:[%s1 + $0x310] sm:$0xff]
      %v492 = vld [vmem:[%s1 + $0x318] sm:$0xff]
      %v493 = vld [vmem:[%s1 + $0x320] sm:$0xff]
      %v494 = vld [vmem:[%s1 + $0x328] sm:$0xff]
      %v495 = vld [vmem:[%s1 + $0x330] sm:$0xff]
      %v496 = vld [vmem:[%s1 + $0x338] sm:$0xff]
      %v497 = vld [vmem:[%s1 + $0x340] sm:$0xff]
      %v498 = vld [vmem:[%s1 + $0x348] sm:$0xff]
      %v499 = vld [vmem:[%s1 + $0x350] sm:$0xff]
      %v500 = vld [vmem:[%s1 + $0x358] sm:$0xff]
      %v501 = vld [vmem:[%s1 + $0x360] sm:$0xff]
      %v502 = vld [vmem:[%s1 + $0x368] sm:$0xff]
      %v503 = vld [vmem:[%s1 + $0x370] sm:$0xff]
      %v504 = vld [vmem:[%s1 + $0x378] sm:$0xff]
      %v505 = vld [vmem:[%s1 + $0x380] sm:$0xff]
      %v506 = vld [vmem:[%s1 + $0x388] sm:$0xff]
      %v507 = vld [vmem:[%s1 + $0x390] sm:$0xff]
      %v508 = vld [vmem:[%s1 + $0x398] sm:$0xff]
      %v509 = vld [vmem:[%s1 + $0x3a0] sm:$0xff]
      %v510 = vld [vmem:[%s1 + $0x3a8] sm:$0xff]
      %v511 = vld [vmem:[%s1 + $0x3b0] sm:$0xff]
      %v512 = vld [vmem:[%s1 + $0x3b8] sm:$0xff]
      %v513 = vld [vmem:[%s1 + $0x3c0] sm:$0xff]
      %v514 = vld [vmem:[%s1 + $0x3c8] sm:$0xff]
      %v515 = vld [vmem:[%s1 + $0x3d0] sm:$0xff]
      %v516 = vld [vmem:[%s1 + $0x3d8] sm:$0xff]
      %v517 = vld [vmem:[%s1 + $0x3e0] sm:$0xff]
      %v518 = vld [vmem:[%s1 + $0x3e8] sm:$0xff]
      %v519 = vld [vmem:[%s1 + $0x3f0] sm:$0xff]
      %v520 = vld [vmem:[%s1 + $0x3f8] sm:$0xff]
      %v521 = vld [vmem:[%s1 + $0x400] sm:$0xff]
      %v522 = vld [vmem:[%s1 + $0x408] sm:$0xff]
      %v523 = vld [vmem:[%s1 + $0x410] sm:$0xff]
      %v524 = vld [vmem:[%s1 + $0x418] sm:$0xff]
      %v525 = vld [vmem:[%s1 + $0x420] sm:$0xff]
      %v526 = vld [vmem:[%s1 + $0x428] sm:$0xff]
      %v527 = vld [vmem:[%s1 + $0x430] sm:$0xff]
      %v528 = vld [vmem:[%s1 + $0x438] sm:$0xff]
      %v529 = vld [vmem:[%s1 + $0x440] sm:$0xff]
      %v530 = vld [vmem:[%s1 + $0x448] sm:$0xff]
      %v531 = vld [vmem:[%s1 + $0x450] sm:$0xff]
      %v532 = vld [vmem:[%s1 + $0x458] sm:$0xff]
      %v533 = vld [vmem:[%s1 + $0x460] sm:$0xff]
      %v534 = vld [vmem:[%s1 + $0x468] sm:$0xff]
      %v535 = vld [vmem:[%s1 + $0x470] sm:$0xff]
      %v536 = vld [vmem:[%s1 + $0x478] sm:$0xff]
      %s537 = scalar_lea.vmem %s3, 2
      %v538 = vld [vmem:[%s537] ss:$8 sm:$0x3]
      %v540 = vperm.slane %v538, 0
      %v541 = vperm.slane %v538, 1
      %544 = vmatpush.msra.mxu0 %v503
      %545 = vmatpush.msra.mxu0 %v501
      %546 = vmatpush.msra.mxu0 %v499
      %547 = vmatpush.msra.mxu0 %v497
      %548 = vmatpush.msra.mxu0 %v495
      %549 = vmatpush.msra.mxu0 %v493
      %550 = vmatpush.msra.mxu0 %v491
      %551 = vmatpush.msra.mxu0 %v489
      %552 = vmatpush.msra.mxu0 %v487
      %553 = vmatpush.msra.mxu0 %v485
      %554 = vmatpush.msra.mxu0 %v483
      %555 = vmatpush.msra.mxu0 %v481
      %556 = vmatpush.msra.mxu0 %v479
      %557 = vmatpush.msra.mxu0 %v477
      %558 = vmatpush.msra.mxu0 %v475
      %559 = vmatpush.msra.mxu0 %v473
      %560 = vmatmul.f32.gmra.mxu0 %v469
      %v561 = vpop.f32.mrf.mxu0
      %v562 = vadd.f32 %v540, %v561
      %563 = vmatmul.f32.gmra.mxu0 %v471
      %v564 = vpop.f32.mrf.mxu0
      %v565 = vadd.f32 %v540, %v564
      %566 = vdwg.mxu0
      %567 = vmatpush.msra.mxu0 %v535
      %568 = vmatpush.msra.mxu0 %v533
      %569 = vmatpush.msra.mxu0 %v531
      %570 = vmatpush.msra.mxu0 %v529
      %571 = vmatpush.msra.mxu0 %v527
      %572 = vmatpush.msra.mxu0 %v525
      %573 = vmatpush.msra.mxu0 %v523
      %574 = vmatpush.msra.mxu0 %v521
      %575 = vmatpush.msra.mxu0 %v519
      %576 = vmatpush.msra.mxu0 %v517
      %577 = vmatpush.msra.mxu0 %v515
      %578 = vmatpush.msra.mxu0 %v513
      %579 = vmatpush.msra.mxu0 %v511
      %580 = vmatpush.msra.mxu0 %v509
      %581 = vmatpush.msra.mxu0 %v507
      %582 = vmatpush.msra.mxu0 %v505
      %583 = vmatmul.f32.gmra.mxu0 %v470
      %v584 = vpop.f32.mrf.mxu0
      %v585 = vadd.f32 %v562, %v584
      %586 = vmatmul.f32.gmra.mxu0 %v472
      %v587 = vpop.f32.mrf.mxu0
      %v588 = vadd.f32 %v565, %v587
      %589 = vdwg.mxu0
      %590 = vmatpush.msra.mxu0 %v504
      %591 = vmatpush.msra.mxu0 %v502
      %592 = vmatpush.msra.mxu0 %v500
      %593 = vmatpush.msra.mxu0 %v498
      %594 = vmatpush.msra.mxu0 %v496
      %595 = vmatpush.msra.mxu0 %v494
      %596 = vmatpush.msra.mxu0 %v492
      %597 = vmatpush.msra.mxu0 %v490
      %598 = vmatpush.msra.mxu0 %v488
      %599 = vmatpush.msra.mxu0 %v486
      %600 = vmatpush.msra.mxu0 %v484
      %601 = vmatpush.msra.mxu0 %v482
      %602 = vmatpush.msra.mxu0 %v480
      %603 = vmatpush.msra.mxu0 %v478
      %604 = vmatpush.msra.mxu0 %v476
      %605 = vmatpush.msra.mxu0 %v474
      %606 = vmatmul.f32.gmra.mxu0 %v469
      %v607 = vpop.f32.mrf.mxu0
      %v608 = vadd.f32 %v541, %v607
      %609 = vmatmul.f32.gmra.mxu0 %v471
      %v610 = vpop.f32.mrf.mxu0
      %v611 = vadd.f32 %v541, %v610
      %612 = vdwg.mxu0
      %613 = vmatpush.msra.mxu0 %v536
      %614 = vmatpush.msra.mxu0 %v534
      %615 = vmatpush.msra.mxu0 %v532
      %616 = vmatpush.msra.mxu0 %v530
      %617 = vmatpush.msra.mxu0 %v528
      %618 = vmatpush.msra.mxu0 %v526
      %619 = vmatpush.msra.mxu0 %v524
      %620 = vmatpush.msra.mxu0 %v522
      %621 = vmatpush.msra.mxu0 %v520
      %622 = vmatpush.msra.mxu0 %v518
      %623 = vmatpush.msra.mxu0 %v516
      %624 = vmatpush.msra.mxu0 %v514
      %625 = vmatpush.msra.mxu0 %v512
      %626 = vmatpush.msra.mxu0 %v510
      %627 = vmatpush.msra.mxu0 %v508
      %628 = vmatpush.msra.mxu0 %v506
      %629 = vmatmul.f32.gmra.mxu0 %v470
      %v630 = vpop.f32.mrf.mxu0
      %v631 = vadd.f32 %v608, %v630
      %632 = vmatmul.f32.gmra.mxu0 %v472
      %v633 = vpop.f32.mrf.mxu0
      %v634 = vadd.f32 %v611, %v633
      %635 = vdwg.mxu0
      %v636 = vmax.f32 %v585, 0.0
      %v637 = vmax.f32 %v631, 0.0
      %v638 = vmax.f32 %v588, 0.0
      %v639 = vmax.f32 %v634, 0.0
      %v640 = vld [vmem:[%s1 + $0x480] sm:$0xff]
      %v641 = vld [vmem:[%s1 + $0x488] sm:$0xff]
      %v642 = vld [vmem:[%s1 + $0x490] sm:$0xff]
      %v643 = vld [vmem:[%s1 + $0x498] sm:$0xff]
      %v644 = vld [vmem:[%s1 + $0x4a0] sm:$0xff]
      %v645 = vld [vmem:[%s1 + $0x4a8] sm:$0xff]
      %v646 = vld [vmem:[%s1 + $0x4b0] sm:$0xff]
      %v647 = vld [vmem:[%s1 + $0x4b8] sm:$0xff]
      %v648 = vld [vmem:[%s1 + $0x4c0] sm:$0xff]
      %v649 = vld [vmem:[%s1 + $0x4c8] sm:$0xff]
      %v650 = vld [vmem:[%s1 + $0x4d0] sm:$0xff]
      %v651 = vld [vmem:[%s1 + $0x4d8] sm:$0xff]
      %v652 = vld [vmem:[%s1 + $0x4e0] sm:$0xff]
      %v653 = vld [vmem:[%s1 + $0x4e8] sm:$0xff]
      %v654 = vld [vmem:[%s1 + $0x4f0] sm:$0xff]
      %v655 = vld [vmem:[%s1 + $0x4f8] sm:$0xff]
      %v656 = vld [vmem:[%s1 + $0x500] sm:$0xff]
      %v657 = vld [vmem:[%s1 + $0x508] sm:$0xff]
      %v658 = vld [vmem:[%s1 + $0x510] sm:$0xff]
      %v659 = vld [vmem:[%s1 + $0x518] sm:$0xff]
      %v660 = vld [vmem:[%s1 + $0x520] sm:$0xff]
      %v661 = vld [vmem:[%s1 + $0x528] sm:$0xff]
      %v662 = vld [vmem:[%s1 + $0x530] sm:$0xff]
      %v663 = vld [vmem:[%s1 + $0x538] sm:$0xff]
      %v664 = vld [vmem:[%s1 + $0x540] sm:$0xff]
      %v665 = vld [vmem:[%s1 + $0x548] sm:$0xff]
      %v666 = vld [vmem:[%s1 + $0x550] sm:$0xff]
      %v667 = vld [vmem:[%s1 + $0x558] sm:$0xff]
      %v668 = vld [vmem:[%s1 + $0x560] sm:$0xff]
      %v669 = vld [vmem:[%s1 + $0x568] sm:$0xff]
      %v670 = vld [vmem:[%s1 + $0x570] sm:$0xff]
      %v671 = vld [vmem:[%s1 + $0x578] sm:$0xff]
      %v672 = vld [vmem:[%s1 + $0x580] sm:$0xff]
      %v673 = vld [vmem:[%s1 + $0x588] sm:$0xff]
      %v674 = vld [vmem:[%s1 + $0x590] sm:$0xff]
      %v675 = vld [vmem:[%s1 + $0x598] sm:$0xff]
      %v676 = vld [vmem:[%s1 + $0x5a0] sm:$0xff]
      %v677 = vld [vmem:[%s1 + $0x5a8] sm:$0xff]
      %v678 = vld [vmem:[%s1 + $0x5b0] sm:$0xff]
      %v679 = vld [vmem:[%s1 + $0x5b8] sm:$0xff]
      %v680 = vld [vmem:[%s1 + $0x5c0] sm:$0xff]
      %v681 = vld [vmem:[%s1 + $0x5c8] sm:$0xff]
      %v682 = vld [vmem:[%s1 + $0x5d0] sm:$0xff]
      %v683 = vld [vmem:[%s1 + $0x5d8] sm:$0xff]
      %v684 = vld [vmem:[%s1 + $0x5e0] sm:$0xff]
      %v685 = vld [vmem:[%s1 + $0x5e8] sm:$0xff]
      %v686 = vld [vmem:[%s1 + $0x5f0] sm:$0xff]
      %v687 = vld [vmem:[%s1 + $0x5f8] sm:$0xff]
      %v688 = vld [vmem:[%s1 + $0x600] sm:$0xff]
      %v689 = vld [vmem:[%s1 + $0x608] sm:$0xff]
      %v690 = vld [vmem:[%s1 + $0x610] sm:$0xff]
      %v691 = vld [vmem:[%s1 + $0x618] sm:$0xff]
      %v692 = vld [vmem:[%s1 + $0x620] sm:$0xff]
      %v693 = vld [vmem:[%s1 + $0x628] sm:$0xff]
      %v694 = vld [vmem:[%s1 + $0x630] sm:$0xff]
      %v695 = vld [vmem:[%s1 + $0x638] sm:$0xff]
      %v696 = vld [vmem:[%s1 + $0x640] sm:$0xff]
      %v697 = vld [vmem:[%s1 + $0x648] sm:$0xff]
      %v698 = vld [vmem:[%s1 + $0x650] sm:$0xff]
      %v699 = vld [vmem:[%s1 + $0x658] sm:$0xff]
      %v700 = vld [vmem:[%s1 + $0x660] sm:$0xff]
      %v701 = vld [vmem:[%s1 + $0x668] sm:$0xff]
      %v702 = vld [vmem:[%s1 + $0x670] sm:$0xff]
      %v703 = vld [vmem:[%s1 + $0x678] sm:$0xff]
      %s704 = scalar_lea.vmem %s3, 3
      %v705 = vld [vmem:[%s704] ss:$8 sm:$0x3]
      %v707 = vperm.slane %v705, 0
      %v708 = vperm.slane %v705, 1
      %711 = vmatpush.msra.mxu0 %v670
      %712 = vmatpush.msra.mxu0 %v668
      %713 = vmatpush.msra.mxu0 %v666
      %714 = vmatpush.msra.mxu0 %v664
      %715 = vmatpush.msra.mxu0 %v662
      %716 = vmatpush.msra.mxu0 %v660
      %717 = vmatpush.msra.mxu0 %v658
      %718 = vmatpush.msra.mxu0 %v656
      %719 = vmatpush.msra.mxu0 %v654
      %720 = vmatpush.msra.mxu0 %v652
      %721 = vmatpush.msra.mxu0 %v650
      %722 = vmatpush.msra.mxu0 %v648
      %723 = vmatpush.msra.mxu0 %v646
      %724 = vmatpush.msra.mxu0 %v644
      %725 = vmatpush.msra.mxu0 %v642
      %726 = vmatpush.msra.mxu0 %v640
      %727 = vmatmul.f32.gmra.mxu0 %v636
      %v728 = vpop.f32.mrf.mxu0
      %v729 = vadd.f32 %v707, %v728
      %730 = vmatmul.f32.gmra.mxu0 %v638
      %v731 = vpop.f32.mrf.mxu0
      %v732 = vadd.f32 %v707, %v731
      %733 = vdwg.mxu0
      %734 = vmatpush.msra.mxu0 %v702
      %735 = vmatpush.msra.mxu0 %v700
      %736 = vmatpush.msra.mxu0 %v698
      %737 = vmatpush.msra.mxu0 %v696
      %738 = vmatpush.msra.mxu0 %v694
      %739 = vmatpush.msra.mxu0 %v692
      %740 = vmatpush.msra.mxu0 %v690
      %741 = vmatpush.msra.mxu0 %v688
      %742 = vmatpush.msra.mxu0 %v686
      %743 = vmatpush.msra.mxu0 %v684
      %744 = vmatpush.msra.mxu0 %v682
      %745 = vmatpush.msra.mxu0 %v680
      %746 = vmatpush.msra.mxu0 %v678
      %747 = vmatpush.msra.mxu0 %v676
      %748 = vmatpush.msra.mxu0 %v674
      %749 = vmatpush.msra.mxu0 %v672
      %750 = vmatmul.f32.gmra.mxu0 %v637
      %v751 = vpop.f32.mrf.mxu0
      %v752 = vadd.f32 %v729, %v751
      %753 = vmatmul.f32.gmra.mxu0 %v639
      %v754 = vpop.f32.mrf.mxu0
      %v755 = vadd.f32 %v732, %v754
      %756 = vdwg.mxu0
      %757 = vmatpush.msra.mxu0 %v671
      %758 = vmatpush.msra.mxu0 %v669
      %759 = vmatpush.msra.mxu0 %v667
      %760 = vmatpush.msra.mxu0 %v665
      %761 = vmatpush.msra.mxu0 %v663
      %762 = vmatpush.msra.mxu0 %v661
      %763 = vmatpush.msra.mxu0 %v659
      %764 = vmatpush.msra.mxu0 %v657
      %765 = vmatpush.msra.mxu0 %v655
      %766 = vmatpush.msra.mxu0 %v653
      %767 = vmatpush.msra.mxu0 %v651
      %768 = vmatpush.msra.mxu0 %v649
      %769 = vmatpush.msra.mxu0 %v647
      %770 = vmatpush.msra.mxu0 %v645
      %771 = vmatpush.msra.mxu0 %v643
      %772 = vmatpush.msra.mxu0 %v641
      %773 = vmatmul.f32.gmra.mxu0 %v636
      %v774 = vpop.f32.mrf.mxu0
      %v775 = vadd.f32 %v708, %v774
      %776 = vmatmul.f32.gmra.mxu0 %v638
      %v777 = vpop.f32.mrf.mxu0
      %v778 = vadd.f32 %v708, %v777
      %779 = vdwg.mxu0
      %780 = vmatpush.msra.mxu0 %v703
      %781 = vmatpush.msra.mxu0 %v701
      %782 = vmatpush.msra.mxu0 %v699
      %783 = vmatpush.msra.mxu0 %v697
      %784 = vmatpush.msra.mxu0 %v695
      %785 = vmatpush.msra.mxu0 %v693
      %786 = vmatpush.msra.mxu0 %v691
      %787 = vmatpush.msra.mxu0 %v689
      %788 = vmatpush.msra.mxu0 %v687
      %789 = vmatpush.msra.mxu0 %v685
      %790 = vmatpush.msra.mxu0 %v683
      %791 = vmatpush.msra.mxu0 %v681
      %792 = vmatpush.msra.mxu0 %v679
      %793 = vmatpush.msra.mxu0 %v677
      %794 = vmatpush.msra.mxu0 %v675
      %795 = vmatpush.msra.mxu0 %v673
      %796 = vmatmul.f32.gmra.mxu0 %v637
      %v797 = vpop.f32.mrf.mxu0
      %v798 = vadd.f32 %v775, %v797
      %799 = vmatmul.f32.gmra.mxu0 %v639
      %v800 = vpop.f32.mrf.mxu0
      %v801 = vadd.f32 %v778, %v800
      %802 = vdwg.mxu0
      %v803 = vmax.f32 %v752, 0.0
      %v804 = vmax.f32 %v798, 0.0
      %v805 = vmax.f32 %v755, 0.0
      %v806 = vmax.f32 %v801, 0.0
      %v807 = vld [vmem:[%s2] sm:$0xff]
      %v808 = vld [vmem:[%s2 + $0x8] sm:$0xff]
      %v809 = vld [vmem:[%s2 + $0x10] sm:$0xff]
      %v810 = vld [vmem:[%s2 + $0x18] sm:$0xff]
      %v811 = vld [vmem:[%s2 + $0x20] sm:$0xff]
      %v812 = vld [vmem:[%s2 + $0x28] sm:$0xff]
      %v813 = vld [vmem:[%s2 + $0x30] sm:$0xff]
      %v814 = vld [vmem:[%s2 + $0x38] sm:$0xff]
      %v815 = vld [vmem:[%s2 + $0x40] sm:$0xff]
      %v816 = vld [vmem:[%s2 + $0x48] sm:$0xff]
      %v817 = vld [vmem:[%s2 + $0x50] sm:$0xff]
      %v818 = vld [vmem:[%s2 + $0x58] sm:$0xff]
      %v819 = vld [vmem:[%s2 + $0x60] sm:$0xff]
      %v820 = vld [vmem:[%s2 + $0x68] sm:$0xff]
      %v821 = vld [vmem:[%s2 + $0x70] sm:$0xff]
      %v822 = vld [vmem:[%s2 + $0x78] sm:$0xff]
      %v823 = vld [vmem:[%s2 + $0x80] sm:$0xff]
      %v824 = vld [vmem:[%s2 + $0x88] sm:$0xff]
      %v825 = vld [vmem:[%s2 + $0x90] sm:$0xff]
      %v826 = vld [vmem:[%s2 + $0x98] sm:$0xff]
      %v827 = vld [vmem:[%s2 + $0xa0] sm:$0xff]
      %v828 = vld [vmem:[%s2 + $0xa8] sm:$0xff]
      %v829 = vld [vmem:[%s2 + $0xb0] sm:$0xff]
      %v830 = vld [vmem:[%s2 + $0xb8] sm:$0xff]
      %v831 = vld [vmem:[%s2 + $0xc0] sm:$0xff]
      %v832 = vld [vmem:[%s2 + $0xc8] sm:$0xff]
      %v833 = vld [vmem:[%s2 + $0xd0] sm:$0xff]
      %v834 = vld [vmem:[%s2 + $0xd8] sm:$0xff]
      %v835 = vld [vmem:[%s2 + $0xe0] sm:$0xff]
      %v836 = vld [vmem:[%s2 + $0xe8] sm:$0xff]
      %v837 = vld [vmem:[%s2 + $0xf0] sm:$0xff]
      %v838 = vld [vmem:[%s2 + $0xf8] sm:$0xff]
      %v839 = vld [vmem:[%s3 + $0x4] ss:$0 sm:$0xff]
      %840 = vmatpush.msra.mxu0 %v822
      %841 = vmatpush.msra.mxu0 %v821
      %842 = vmatpush.msra.mxu0 %v820
      %843 = vmatpush.msra.mxu0 %v819
      %844 = vmatpush.msra.mxu0 %v818
      %845 = vmatpush.msra.mxu0 %v817
      %846 = vmatpush.msra.mxu0 %v816
      %847 = vmatpush.msra.mxu0 %v815
      %848 = vmatpush.msra.mxu0 %v814
      %849 = vmatpush.msra.mxu0 %v813
      %850 = vmatpush.msra.mxu0 %v812
      %851 = vmatpush.msra.mxu0 %v811
      %852 = vmatpush.msra.mxu0 %v810
      %853 = vmatpush.msra.mxu0 %v809
      %854 = vmatpush.msra.mxu0 %v808
      %855 = vmatpush.msra.mxu0 %v807
      %856 = vmatmul.f32.gmra.mxu0 %v803
      %v857 = vpop.f32.mrf.mxu0
      %v858 = vadd.f32 %v839, %v857
      %859 = vmatmul.f32.gmra.mxu0 %v805
      %v860 = vpop.f32.mrf.mxu0
      %v861 = vadd.f32 %v839, %v860
      %862 = vdwg.mxu0
      %863 = vmatpush.msra.mxu0 %v838
      %864 = vmatpush.msra.mxu0 %v837
      %865 = vmatpush.msra.mxu0 %v836
      %866 = vmatpush.msra.mxu0 %v835
      %867 = vmatpush.msra.mxu0 %v834
      %868 = vmatpush.msra.mxu0 %v833
      %869 = vmatpush.msra.mxu0 %v832
      %870 = vmatpush.msra.mxu0 %v831
      %871 = vmatpush.msra.mxu0 %v830
      %872 = vmatpush.msra.mxu0 %v829
      %873 = vmatpush.msra.mxu0 %v828
      %874 = vmatpush.msra.mxu0 %v827
      %875 = vmatpush.msra.mxu0 %v826
      %876 = vmatpush.msra.mxu0 %v825
      %877 = vmatpush.msra.mxu0 %v824
      %878 = vmatpush.msra.mxu0 %v823
      %879 = vmatmul.f32.gmra.mxu0 %v804
      %v880 = vpop.f32.mrf.mxu0
      %v881 = vadd.f32 %v858, %v880
      %882 = vmatmul.f32.gmra.mxu0 %v806
      %v883 = vpop.f32.mrf.mxu0
      %v884 = vadd.f32 %v861, %v883
      %885 = vdwg.mxu0
      %v886 = vmul.f32 %v881, %v881
      %v887 = vmul.f32 %v884, %v884
      %v888 = vld [vmem:[%s2 + $0x100] sm:$0xff]
      %v889 = vld [vmem:[%s2 + $0x108] sm:$0xff]
      %v890 = vld [vmem:[%s2 + $0x110] sm:$0xff]
      %v891 = vld [vmem:[%s2 + $0x118] sm:$0xff]
      %v892 = vld [vmem:[%s2 + $0x120] sm:$0xff]
      %v893 = vld [vmem:[%s2 + $0x128] sm:$0xff]
      %v894 = vld [vmem:[%s2 + $0x130] sm:$0xff]
      %v895 = vld [vmem:[%s2 + $0x138] sm:$0xff]
      %v896 = vld [vmem:[%s2 + $0x140] sm:$0xff]
      %v897 = vld [vmem:[%s2 + $0x148] sm:$0xff]
      %v898 = vld [vmem:[%s2 + $0x150] sm:$0xff]
      %v899 = vld [vmem:[%s2 + $0x158] sm:$0xff]
      %v900 = vld [vmem:[%s2 + $0x160] sm:$0xff]
      %v901 = vld [vmem:[%s2 + $0x168] sm:$0xff]
      %v902 = vld [vmem:[%s2 + $0x170] sm:$0xff]
      %v903 = vld [vmem:[%s2 + $0x178] sm:$0xff]
      %904 = vmatpush.msra.mxu0 %v903
      %905 = vmatpush.msra.mxu0 %v902
      %906 = vmatpush.msra.mxu0 %v901
      %907 = vmatpush.msra.mxu0 %v900
      %908 = vmatpush.msra.mxu0 %v899
      %909 = vmatpush.msra.mxu0 %v898
      %910 = vmatpush.msra.mxu0 %v897
      %911 = vmatpush.msra.mxu0 %v896
      %912 = vmatpush.msra.mxu0 %v895
      %913 = vmatpush.msra.mxu0 %v894
      %914 = vmatpush.msra.mxu0 %v893
      %915 = vmatpush.msra.mxu0 %v892
      %916 = vmatpush.msra.mxu0 %v891
      %917 = vmatpush.msra.mxu0 %v890
      %918 = vmatpush.msra.mxu0 %v889
      %919 = vmatpush.msra.mxu0 %v888
      %920 = vmatmul.f32.gmra.mxu0 %v886
      %v921 = vpop.f32.mrf.mxu0
      %v922 = vadd.f32 0.0, %v921
      %923 = vmatmul.f32.gmra.mxu0 %v887
      %v924 = vpop.f32.mrf.mxu0
      %v925 = vadd.f32 0.0, %v924
      %926 = vdwg.mxu0
      %v927 = vmax.f32 %v922, 1e-24
      %v928 = vmax.f32 %v925, 1e-24
      %v929 = vrsqrt.pop %v927
      %v930 = vmul.f32 %v929, %v927
      %v931 = vmul.f32 %v930, %v929
      %v932 = vmul.f32 0.5, %v931
      %v933 = vsub.f32 1.5, %v932
      %v934 = vmul.f32 %v929, %v933
      %vm935 = vweird.f32 %v927
      %vm936 = vweird.f32 %v929
      %vm937 = vmor %vm935, %vm936
      %v938 = vsel %vm937, %v929, %v934
      %v939 = vrsqrt.pop %v928
      %v940 = vmul.f32 %v939, %v928
      %v941 = vmul.f32 %v940, %v939
      %v942 = vmul.f32 0.5, %v941
      %v943 = vsub.f32 1.5, %v942
      %v944 = vmul.f32 %v939, %v943
      %vm945 = vweird.f32 %v928
      %vm946 = vweird.f32 %v939
      %vm947 = vmor %vm945, %vm946
      %v948 = vsel %vm947, %v939, %v944
      %v949 = vmul.f32 %v881, %v938
      %v950 = vmul.f32 %v884, %v948
      %v951 = vld [vmem:[%s4] sm:$0xff]
      %v952 = vld [vmem:[%s4 + $0x8] sm:$0xff]
      %v953 = vld [vmem:[%s4 + $0x10] sm:$0xff]
      %vm954 = vcmask 130048
      %v956 = vsel %vm954, %v951, 0
      %v959 = vsel %vm954, %v952, 0
      %v962 = vsel %vm954, %v953, 0
      %964 = vmatpush.msra.mxu0 0.0
      %965 = vmatpush.msra.mxu0 0.0
      %966 = vmatpush.msra.mxu0 0.0
      %967 = vmatpush.msra.mxu0 0.0
      %968 = vmatpush.msra.mxu0 0.0
      %969 = vmatpush.msra.mxu0 0.0
      %970 = vmatpush.msra.mxu0 0.0
      %971 = vmatpush.msra.mxu0 0.0
      %972 = vmatpush.msra.mxu0 0.0
      %973 = vmatpush.msra.mxu0 0.0
      %974 = vmatpush.msra.mxu0 0.0
      %975 = vmatpush.msra.mxu0 0.0
      %976 = vmatpush.msra.mxu0 0.0
      %977 = vmatpush.msra.mxu0 0.0
      %978 = vmatpush.msra.mxu0 %v950
      %979 = vmatpush.msra.mxu0 %v949
      %980 = vmatmul.f32.gmra.mxu0 %v956
      %v981 = vpop.f32.mrf.mxu0
      %v982 = vadd.f32 0.0, %v981
      %983 = vmatmul.f32.gmra.mxu0 %v959
      %v984 = vpop.f32.mrf.mxu0
      %v985 = vadd.f32 0.0, %v984
      %986 = vmatmul.f32.gmra.mxu0 %v962
      %v987 = vpop.f32.mrf.mxu0
      %v988 = vadd.f32 0.0, %v987
      %989 = vdwg.mxu0
      %990 = vst [vmem:[%s224] sm:$0xff] %v982
      %991 = vst [vmem:[%s224 + $0x8] sm:$0xff] %v985
      %992 = vst [vmem:[%s224 + $0x10] sm:$0xff] %v988
      %p993 = scmp.lt.s32.totalorder %s16, 1
      %s994 = scalar_select %p993, %s16, 1
      %s995 = smul.addr %s994, 3
      %s996 = smul.addr %s995, 8
      %s997 = scalar_lea.vmem %s5, %s996
      // Predicated region
      $region41: #{seasonality_block_forward.1} parent=39 // pred_check
        %p998 = pneg %p144
      $region42: #{seasonality_block_forward.1} parent=39 // pred_check_branch
        %1000 = sbr.rel (%p998) target = $region44
      $region43: #{seasonality_block_forward.1} parent=39 // pred_region
        _
      $region44: #{seasonality_block_forward.1} parent=39 // pred_fallthru
        _
    $region40: #{seasonality_block_forward.1} parent=5 // pred_fallthru
      _
    %p1001 = scmp.le.s32.totalorder 2, %s11
    // Predicated region
    $region45: #{seasonality_block_forward.1} parent=5 // pred_check
      %p1002 = pneg %p1001
    $region46: #{seasonality_block_forward.1} parent=5 // pred_check_branch
      %1004 = sbr.rel (%p1002) target = $region48
    $region47: #{seasonality_block_forward.1} parent=5 // pred_region
      %s1005 = ssub.s32 %s11, 2
      // Predicated region
      $region49: #{seasonality_block_forward.1} parent=47 // pred_check
        %p1006 = pneg %p150
      $region50: #{seasonality_block_forward.1} parent=47 // pred_check_branch
        %1008 = sbr.rel (%p1006) target = $region52
      $region51: #{seasonality_block_forward.1} parent=47 // pred_region
        %p1009 = scmp.lt.s32.totalorder %s17, 1
        %s1010 = scalar_select %p1009, %s17, 1
        %s1011 = smul.addr %s1010, 3
        %s1012 = smul.addr %s1011, 8
        %s1013 = scalar_lea.vmem %s5, %s1012
      $region52: #{seasonality_block_forward.1} parent=47 // pred_fallthru
        _
    $region48: #{seasonality_block_forward.1} parent=5 // pred_fallthru
      _
  $region6: #{seasonality_block_forward.1} parent=0 // loop_footer
    %s15 = sadd.s32 1, %s11
  $region7: #{seasonality_block_forward.1} parent=0 // loop_footer_branch
    %10 = sbr.rel target = $region3
  $region8: #{seasonality_block_forward.1} parent=0 // loop_exit
    _

</llo_original>
